<compile_context>
chip_gen: v6e
topology: v6e:2x2x1
jax: 0.10.0
libtpu: 0.0.40
codegen_flags: <defaults>
</compile_context>

<pallas_src>
import functools

import jax
import jax.numpy as jnp
from jax.experimental import pallas as pl
from jax.experimental.pallas import tpu as pltpu


def _round_up(v, m):
    return -(-v // m) * m


def _vmem_budget_bytes():
    """Generation-aware VMEM budget: physical capacity minus headroom."""
    cap = 64 << 20  # conservative fallback (v7x per-core VMEM)
    try:
        info = pltpu.get_tpu_info()
        cap = int(getattr(info, "vmem_capacity_bytes", cap))
    except Exception:
        pass
    # Leave headroom for double-buffer semaphores / internal scratch:
    # ~96 MiB usable on 128 MiB parts (v5e/v6e), ~48 MiB on 64 MiB parts (v7x).
    return max(32 << 20, min(cap - (16 << 20), 96 << 20))


def _choose_n_tile(n, max_tn):
    """Lane-dense (multiple-of-128) tile: minimize grid steps, then padding."""
    n128 = _round_up(n, 128)
    max_tn = max(128, (max_tn // 128) * 128)
    if n128 <= max_tn:
        return n128, n128  # whole (padded) N fits in one tile
    best = None  # key = (num_tiles, padded_len, -tile)
    for cand in range(128, max_tn + 1, 128):
        num = -(-n // cand)
        key = (num, num * cand, -cand)
        if best is None or key < best[0]:
            best = (key, cand, num * cand)
    return best[1], best[2]


# ---------------------------------------------------------------------------
# Phase 1: attn = gamma * softmax(-(x @ x^T)) per batch.  Energy is accumulated
# over N tiles into an f32 VMEM scratch; softmax + gamma fold on the last step.
# ---------------------------------------------------------------------------
def _cam_attention_kernel(gamma_ref, x_ref, attn_ref, acc_ref, *, compute_dtype):
    n = pl.program_id(1)

    @pl.when(n == 0)
    def _init():
        acc_ref[...] = jnp.zeros_like(acc_ref)

    xb = x_ref[0].astype(compute_dtype)          # (C, tn) MXU operand
    # energy += x_tile @ x_tile^T, contracting the last (lane) dim of both
    # operands -- no XLU transpose; f32 accumulation on the MXU.
    acc_ref[...] += jax.lax.dot_general(
        xb, xb,
        dimension_numbers=(((1,), (1,)), ((), ())),
        preferred_element_type=jnp.float32)

    @pl.when(n == pl.num_programs(1) - 1)
    def _finalize():
        energy = acc_ref[...]                    # (C, C) f32
        # softmax(rowmax - energy) == softmax(-energy); stable via row-min.
        e = jnp.exp(jnp.min(energy, axis=-1, keepdims=True) - energy)
        attn = e / jnp.sum(e, axis=-1, keepdims=True)
        attn_ref[0] = (gamma_ref[0] * attn).astype(attn_ref.dtype)


# ---------------------------------------------------------------------------
# Phase 2: out tile = (gamma-scaled attention) @ x_tile + x_tile.
# ---------------------------------------------------------------------------
def _cam_apply_kernel(attn_ref, x_ref, out_ref, *, compute_dtype):
    xb = x_ref[0]                                # (C, tn)
    out = jnp.dot(attn_ref[0], xb.astype(compute_dtype),
                  preferred_element_type=jnp.float32)
    out_ref[0] = (out + xb.astype(jnp.float32)).astype(out_ref.dtype)


# ---------------------------------------------------------------------------
# Fused single-pass variant: one batch's padded (C, N) slab resident in VMEM.
# ---------------------------------------------------------------------------
def _cam_fused_kernel(gamma_ref, x_ref, out_ref, *, compute_dtype):
    xb = x_ref[0]                                # (C, N_pad)
    xm = xb.astype(compute_dtype)
    energy = jax.lax.dot_general(
        xm, xm, dimension_numbers=(((1,), (1,)), ((), ())),
        preferred_element_type=jnp.float32)
    e = jnp.exp(jnp.min(energy, axis=-1, keepdims=True) - energy)
    attn = gamma_ref[0] * (e / jnp.sum(e, axis=-1, keepdims=True))
    out = jnp.dot(attn.astype(compute_dtype), xm,
                  preferred_element_type=jnp.float32)
    out_ref[0] = (out + xb.astype(jnp.float32)).astype(out_ref.dtype)


def cam_module(x, gamma, *, mxu_dtype=None, n_tile=None, force_two_phase=False):
    """Channel-attention forward.  x: (B, C, N), gamma: scalar/(1,) -> (B, C, N)."""
    B, C, N = x.shape
    gamma = jnp.asarray(gamma, jnp.float32).reshape((1,))

    # MXU compute dtype: native sub-32-bit dtypes stay as-is; f32 inputs use
    # exact f32 matmuls unless the caller opts into the fast bf16 MXU path.
    if mxu_dtype is not None:
        compute_dtype = jnp.dtype(mxu_dtype)
    elif jnp.dtype(x.dtype).itemsize < 4:
        compute_dtype = jnp.dtype(x.dtype)
    else:
        compute_dtype = jnp.dtype(jnp.float32)

    in_size = jnp.dtype(x.dtype).itemsize
    cd_size = compute_dtype.itemsize
    budget = _vmem_budget_bytes()
    n128 = _round_up(N, 128)

    def _params(sem, est_bytes):
        kw = dict(dimension_semantics=sem)
        # Raise the scoped VMEM limit only when the estimate may exceed the
        # smallest per-generation default (16 MiB on v5e), capped by `budget`.
        if est_bytes > (16 << 20):
            kw["vmem_limit_bytes"] = min(max(int(est_bytes * 3 // 2), 32 << 20),
                                         budget)
        return pltpu.CompilerParams(**kw)

    # ---- fused single-pass path: one batch's padded slab fits the budget ---
    fused_bytes = (4 * C * n128 * in_size        # x + out slabs, double-buffered
                   + C * n128 * cd_size          # casted MXU operand
                   + C * n128 * 4                # f32 matmul result
                   + 4 * C * C * 4)              # energy / softmax temporaries
    use_fused = (not force_two_phase) and (n_tile is None) and \
        fused_bytes <= int(0.8 * budget)

    if use_fused:
        tn, n_pad = n128, n128
    elif n_tile is not None:
        tn = int(n_tile)
        n_pad = _round_up(N, tn)
    else:
        fixed = 2 * C * C * cd_size + 4 * C * C * 4
        per_col = C * (4 * in_size + cd_size + 4)
        avail = int(0.75 * budget) - fixed
        max_tn = max(128, avail // per_col) if avail > 0 else 128
        tn, n_pad = _choose_n_tile(N, max_tn)
    n_tiles = n_pad // tn

    # Zero-pad N to a lane-dense tile multiple: padded columns add 0 to the
    # energy and produce 0 output columns, which are sliced away below.
    x_in = x if n_pad == N else jnp.pad(x, ((0, 0), (0, 0), (0, n_pad - N)))

    if use_fused:
        out = pl.pallas_call(
            functools.partial(_cam_fused_kernel, compute_dtype=compute_dtype),
            out_shape=jax.ShapeDtypeStruct((B, C, n_pad), x.dtype),
            grid=(B,),
            in_specs=[
                pl.BlockSpec(memory_space=pltpu.MemorySpace.SMEM),      # gamma
                pl.BlockSpec((1, C, n_pad), lambda b: (b, 0, 0)),       # x slab
            ],
            out_specs=pl.BlockSpec((1, C, n_pad), lambda b: (b, 0, 0)),
            compiler_params=_params(("parallel",), fused_bytes),
        )(gamma, x_in)
    else:
        p1_est = (3 * C * tn * (in_size + 1) + 2 * C * C * cd_size
                  + 3 * C * C * 4)
        p2_est = (4 * C * tn * in_size + C * tn * cd_size + C * tn * 4
                  + 2 * C * C * cd_size + C * C * 4)

        # Phase 1: gamma-scaled attention, stored in the compute dtype.
        attention = pl.pallas_call(
            functools.partial(_cam_attention_kernel, compute_dtype=compute_dtype),
            out_shape=jax.ShapeDtypeStruct((B, C, C), compute_dtype),
            grid=(B, n_tiles),
            in_specs=[
                pl.BlockSpec(memory_space=pltpu.MemorySpace.SMEM),      # gamma
                pl.BlockSpec((1, C, tn), lambda b, n: (b, 0, n)),       # x tile
            ],
            out_specs=pl.BlockSpec((1, C, C), lambda b, n: (b, 0, 0)),
            scratch_shapes=[pltpu.VMEM((C, C), jnp.float32)],           # f32 acc
            compiler_params=_params(("parallel", "arbitrary"), p1_est),
        )(gamma, x_in)

        # Phase 2: out = attention @ x + x, fully parallel, lane-dense stores.
        out = pl.pallas_call(
            functools.partial(_cam_apply_kernel, compute_dtype=compute_dtype),
            out_shape=jax.ShapeDtypeStruct((B, C, n_pad), x.dtype),
            grid=(B, n_tiles),
            in_specs=[
                pl.BlockSpec((1, C, C), lambda b, n: (b, 0, 0)),        # attention
                pl.BlockSpec((1, C, tn), lambda b, n: (b, 0, n)),       # x tile
            ],
            out_specs=pl.BlockSpec((1, C, tn), lambda b, n: (b, 0, n)),
            compiler_params=_params(("parallel", "parallel"), p2_est),
        )(attention, x_in)

    return out if n_pad == N else out[:, :, :N]


def cam_reference(x, gamma):
    """Pure-JAX reference mirroring the PyTorch forward."""
    energy = jnp.einsum("bcn,bdn->bcd", x, x)
    energy_new = jnp.max(energy, axis=-1, keepdims=True) - energy
    attention = jax.nn.softmax(energy_new, axis=-1)
    out = jnp.einsum("bcd,bdn->bcn", attention, x)
    return gamma * out + x


if __name__ == "__main__":
    key = jax.random.PRNGKey(0)
    B, C, H, W = 2, 8, 16, 16
    N = H * W

    x = jax.random.normal(key, (B, C, N), dtype=jnp.float32)
    gamma0 = jnp.zeros((1,), dtype=jnp.float32)            # module init value
    gamma1 = jnp.array([0.5], dtype=jnp.float32)

    ref0 = cam_reference(x, gamma0)
    ref1 = cam_reference(x, gamma1)

    # --- f32 inputs, fused single-pass path (auto-selected at these shapes) --
    out0 = jax.block_until_ready(cam_module(x, gamma0))
    out1 = jax.block_until_ready(cam_module(x, gamma1))
    assert jnp.allclose(out0, ref0, atol=2e-3, rtol=2e-3), \
        float(jnp.max(jnp.abs(out0 - ref0)))
    assert jnp.allclose(out1, ref1, atol=2e-3, rtol=2e-3), \
        float(jnp.max(jnp.abs(out1 - ref1)))

    # --- f32 inputs, explicit two-phase (N-tiled) path -----------------------
    out2 = jax.block_until_ready(cam_module(x, gamma1, force_two_phase=True))
    assert jnp.allclose(out2, ref1, atol=2e-3, rtol=2e-3), \
        float(jnp.max(jnp.abs(out2 - ref1)))

    # --- bf16 inputs: native bf16 MXU path + bf16 attention round trip -------
    xb16 = x.astype(jnp.bfloat16)
    refb = cam_reference(xb16.astype(jnp.float32), gamma1)
    out3 = jax.block_until_ready(cam_module(xb16, gamma1)).astype(jnp.float32)
    out4 = jax.block_until_ready(
        cam_module(xb16, gamma1, force_two_phase=True)).astype(jnp.float32)
    assert jnp.allclose(out3, refb, atol=5e-2, rtol=5e-2), \
        float(jnp.max(jnp.abs(out3 - refb)))
    assert jnp.allclose(out4, refb, atol=5e-2, rtol=5e-2), \
        float(jnp.max(jnp.abs(out4 - refb)))

    # --- f32 inputs with opt-in bf16 MXU operands (fast-path from review) ----
    ref5 = cam_reference(x.astype(jnp.bfloat16).astype(jnp.float32), gamma1)
    out5 = jax.block_until_ready(cam_module(x, gamma1, mxu_dtype=jnp.bfloat16))
    assert jnp.allclose(out5, ref5, atol=5e-2, rtol=5e-2), \
        float(jnp.max(jnp.abs(out5 - ref5)))

    print("KERNEL_OK")
</pallas_src>

<mosaic_0001>
module attributes {stable_mosaic.version = 11 : i64} {
  func.func @_cam_fused_kernel(%arg0: i32, %arg1: memref<1xf32, #tpu.memory_space<smem>>, %arg2: memref<1x8x256xf32, #tpu.memory_space<vmem>>, %arg3: memref<1x8x256xf32, #tpu.memory_space<vmem>>) attributes {dimension_semantics = [#tpu.dimension_semantics<parallel>], iteration_bounds = array<i64: 2>, scalar_prefetch = 0 : i64, scratch_operands = 0 : i64, tpu.core_type = #tpu.core_type<tc>, window_params = [{transform_indices = @transform_0, window_bounds = array<i64: 1>}, {transform_indices = @transform_1, window_bounds = array<i64: 1, 8, 256>}, {transform_indices = @transform_2, window_bounds = array<i64: 1, 8, 256>}]} {
    %c0 = arith.constant 0 : index
    %c0_0 = arith.constant 0 : index
    %c0_1 = arith.constant 0 : index
    %0 = vector.load %arg2[%c0, %c0_0, %c0_1] : memref<1x8x256xf32, #tpu.memory_space<vmem>>, vector<1x8x256xf32>
    %1 = vector.shape_cast %0 : vector<1x8x256xf32> to vector<8x256xf32>
    %cst = arith.constant dense<0.000000e+00> : vector<8x8xf32>
    %2 = tpu.matmul %1, %1, %cst {dimension_numbers = #tpu.dot_dimension_numbers<[1], [1], [0], [0], [0, 0, 1, 0], [], []>} : vector<8x256xf32>, vector<8x256xf32>, vector<8x8xf32> -> vector<8x8xf32>
    %cst_2 = arith.constant dense<0x7F800000> : vector<8xf32>
    %3 = vector.multi_reduction <minimumf>, %2, %cst_2 [1] : vector<8x8xf32> to vector<8xf32>
    %4 = vector.shape_cast %3 : vector<8xf32> to vector<8x1xf32>
    %5 = vector.broadcast %4 : vector<8x1xf32> to vector<8x8xf32>
    %6 = arith.subf %5, %2 : vector<8x8xf32>
    %7 = math.exp %6 : vector<8x8xf32>
    %c0_3 = arith.constant 0 : index
    %8 = memref.load %arg1[%c0_3] : memref<1xf32, #tpu.memory_space<smem>>
    %cst_4 = arith.constant dense<0.000000e+00> : vector<8xf32>
    %9 = vector.multi_reduction <add>, %7, %cst_4 [1] : vector<8x8xf32> to vector<8xf32>
    %10 = vector.shape_cast %9 : vector<8xf32> to vector<8x1xf32>
    %11 = vector.broadcast %10 : vector<8x1xf32> to vector<8x8xf32>
    %12 = arith.divf %7, %11 : vector<8x8xf32>
    %13 = vector.broadcast %8 : f32 to vector<8x8xf32>
    %14 = arith.mulf %13, %12 : vector<8x8xf32>
    %cst_5 = arith.constant dense<0.000000e+00> : vector<8x256xf32>
    %15 = tpu.matmul %14, %1, %cst_5 {dimension_numbers = #tpu.dot_dimension_numbers<[1], [0], [0], [1], [0, 0, 1, 1], [], []>} : vector<8x8xf32>, vector<8x256xf32>, vector<8x256xf32> -> vector<8x256xf32>
    %16 = arith.addf %15, %1 : vector<8x256xf32>
    %c0_6 = arith.constant 0 : index
    %c0_7 = arith.constant 0 : index
    %c0_8 = arith.constant 0 : index
    %17 = vector.load %arg3[%c0_6, %c0_7, %c0_8] : memref<1x8x256xf32, #tpu.memory_space<vmem>>, vector<1x8x256xf32>
    %18 = vector.shape_cast %17 : vector<1x8x256xf32> to vector<8x256xf32>
    %19 = vector.shape_cast %16 : vector<8x256xf32> to vector<1x8x256xf32>
    tpu.vector_store %arg3[%c0_6, %c0_7, %c0_8], %19 {strides = array<i32>} : memref<1x8x256xf32, #tpu.memory_space<vmem>>, vector<1x8x256xf32>,
    return
  }
  func.func @transform_0(%arg0: i32) -> i32 {
    %c0_i32 = arith.constant 0 : i32
    %c0_i32_0 = arith.constant 0 : i32
    return %c0_i32 : i32
  }
  func.func @transform_1(%arg0: i32) -> (i32, i32, i32) {
    %c0_i32 = arith.constant 0 : i32
    %c0_i32_0 = arith.constant 0 : i32
    %c0_i32_1 = arith.constant 0 : i32
    return %arg0, %c0_i32, %c0_i32_0 : i32, i32, i32
  }
  func.func @transform_2(%arg0: i32) -> (i32, i32, i32) {
    %c0_i32 = arith.constant 0 : i32
    %c0_i32_0 = arith.constant 0 : i32
    %c0_i32_1 = arith.constant 0 : i32
    return %arg0, %c0_i32, %c0_i32_0 : i32, i32, i32
  }
}

</mosaic_0001>

<llo_original>
// kernel: tpu_custom_call.1
$region0: #{tpu_custom_call.1}
  #allocation0 [shape = 'u32[]', space=smem, size = 0x4, offset = 0x4, fixed_abs, tag = 'smem constant byte address 0x4 - core index']
  #allocation1 [shape = 'u32[144,128]{1,0:T(1,128)}', space=vmem, size = 0x12000, scoped, tag = 'internal scratch']
  #allocation2 [shape = 'f32[1]{0:T(128)S(6)}', space=smem, size = 0x200, scoped, tag = 'scoped memory for tpu_custom_call.1']
  %s0 = inlined_call_operand.<no memory space> [shape: f32[1], index: 0, kind: input, shape index: {}]
  %s1 = inlined_call_operand.hbm [shape: f32[2,8,256], index: 1, kind: input, shape index: {}]
  %s2 = inlined_call_operand.hbm [shape: f32[2,8,256], index: 2, kind: output, shape index: {}]
  %s3 = sld [smem:[#allocation0]]
  $region45: #{tpu_custom_call.1} parent=0
    _
  %s5 = ssub.s32 1, %s3
  %s6 = scalar_select 0, %s5, %s3
  %7 = sst [smem:[#allocation2]] %s0
  $region1: #{tpu_custom_call.1} parent=0
    #allocation3 [shape = 'u8[16384]{0}', space=vmem, size = 0x4000, scoped, tag = 'input window, operand 1']
    #allocation4 [shape = 's32[2]{0}', space=sflag, size = 0x8, scoped, tag = 'scoped memory for tpu_custom_call.1']
    #allocation5 [shape = 's32[2]{0}', space=sflag, size = 0x8, scoped, tag = 'scoped memory for tpu_custom_call.1']
    #allocation6 [shape = 'u8[16384]{0}', space=vmem, size = 0x4000, scoped, tag = 'output window, operand 0']
    %8 = vsyncpa [#allocation4], 0
    %s9 = scalar_lea.sflag [#allocation4], 1
    %10 = vsyncpa %s9, 0
    %11 = vsyncpa [#allocation5], 0
    %s12 = scalar_lea.sflag [#allocation5], 1
    %13 = vsyncpa %s12, 0
    loop: start=0, step=1, limit=4
    $region2: #{tpu_custom_call.1} parent=1 // loop_pre_header
      _
    $region3: #{tpu_custom_call.1} parent=1 // loop_header
      %s15 = sphi 0, %s19
      %p16 = scmp.ge.s32.totalorder %s15, 4
      %s23 = sphi 0, %s23
      %s25 = sphi 0, %s23
      %s26 = sphi 0, %s25
      %s40 = sphi 0, %s26
      %s46 = sphi 0, %s48
      %s49 = sphi 0, %s46
      %s50 = sphi 0, %s49
      %s66 = sphi 0, %s50
      %s72 = sphi 0, %s74
      %s75 = sphi 0, %s72
      %s76 = sphi 0, %s75
      %s92 = sphi 0, %s76
    $region4: #{tpu_custom_call.1} parent=1 // loop_header_branch
      %18 = sbr.rel (%p16) target = $region8
    $region5: #{tpu_custom_call.1} parent=1 // loop_body
      %s20 = ssub.s32 %s15, 1
      %s21 = ssub.s32 %s15, 2
      %s22 = sadd.s32 %s15, 1
      %s24 = sadd.s32 %s23, 1
      %p27 = scmp.eq.s32.totalorder %s15, 1
      %p28 = scmp.ne.s32.totalorder %s23, %s25
      %p29 = scmp.eq.s32.totalorder %s15, 0
      %p30 = por %p28, %p29
      %p31 = scmp.ne.s32.totalorder %s23, %s25
      %p32 = scmp.eq.s32.totalorder %s20, 1
      %p33 = por %p31, %p32
      %p34 = scmp.ne.s32.totalorder %s25, %s26
      %p35 = scmp.eq.s32.totalorder %s20, 0
      %p36 = por %p34, %p35
      %p37 = scmp.ne.s32.totalorder %s25, %s26
      %p38 = scmp.eq.s32.totalorder %s21, 1
      %p39 = por %p37, %p38
      %p41 = scmp.ne.s32.totalorder %s26, %s40
      %p42 = scmp.eq.s32.totalorder %s21, 0
      %p43 = por %p41, %p42
      %s44 = ssub.s32 %s15, %s22
      %p45 = scmp.eq.s32.totalorder %s44, 0
      %s47 = sadd.s32 %s46, 1
      %s48 = scalar_select %p45, %s46, %s47
      %p51 = pneg %p45
      %p52 = scmp.eq.s32.totalorder %s15, 1
      %p53 = por %p51, %p52
      %p54 = scmp.ne.s32.totalorder %s46, %s49
      %p55 = scmp.eq.s32.totalorder %s15, 0
      %p56 = por %p54, %p55
      %p57 = scmp.ne.s32.totalorder %s46, %s49
      %p58 = scmp.eq.s32.totalorder %s20, 1
      %p59 = por %p57, %p58
      %p60 = scmp.ne.s32.totalorder %s49, %s50
      %p61 = scmp.eq.s32.totalorder %s20, 0
      %p62 = por %p60, %p61
      %p63 = scmp.ne.s32.totalorder %s49, %s50
      %p64 = scmp.eq.s32.totalorder %s21, 1
      %p65 = por %p63, %p64
      %p67 = scmp.ne.s32.totalorder %s50, %s66
      %p68 = scmp.eq.s32.totalorder %s21, 0
      %p69 = por %p67, %p68
      %s70 = ssub.s32 %s15, %s22
      %p71 = scmp.eq.s32.totalorder %s70, 0
      %s73 = sadd.s32 %s72, 1
      %s74 = scalar_select %p71, %s72, %s73
      %p77 = pneg %p71
      %p78 = scmp.eq.s32.totalorder %s15, 1
      %p79 = por %p77, %p78
      %p80 = scmp.ne.s32.totalorder %s72, %s75
      %p81 = scmp.eq.s32.totalorder %s15, 0
      %p82 = por %p80, %p81
      %p83 = scmp.ne.s32.totalorder %s72, %s75
      %p84 = scmp.eq.s32.totalorder %s20, 1
      %p85 = por %p83, %p84
      %p86 = scmp.ne.s32.totalorder %s75, %s76
      %p87 = scmp.eq.s32.totalorder %s20, 0
      %p88 = por %p86, %p87
      %p89 = scmp.ne.s32.totalorder %s75, %s76
      %p90 = scmp.eq.s32.totalorder %s21, 1
      %p91 = por %p89, %p90
      %p93 = scmp.ne.s32.totalorder %s76, %s92
      %p94 = scmp.eq.s32.totalorder %s21, 0
      %p95 = por %p93, %p94
      %p96 = scmp.le.s32.totalorder 1, %s15
      %p97 = scmp.lt.s32.totalorder %s15, 3
      %p98 = pnand %p96, %p97
      %p99 = pneg %p98
      // Predicated region
      $region9: #{tpu_custom_call.1} parent=5 // pred_check
        _
      $region10: #{tpu_custom_call.1} parent=5 // pred_check_branch
        %101 = sbr.rel (%p98) target = $region12
      $region11: #{tpu_custom_call.1} parent=5 // pred_region
        %s102 = ssub.s32 %s15, 1
        // Predicated region
        $region13: #{tpu_custom_call.1} parent=11 // pred_check
          %p103 = pneg %p36
        $region14: #{tpu_custom_call.1} parent=11 // pred_check_branch
          %105 = sbr.rel (%p103) target = $region16
        $region15: #{tpu_custom_call.1} parent=11 // pred_region
          _
        $region16: #{tpu_custom_call.1} parent=11 // pred_fallthru
          _
      $region12: #{tpu_custom_call.1} parent=5 // pred_fallthru
        _
      %p106 = scmp.lt.s32.totalorder %s15, 2
      // Predicated region
      $region17: #{tpu_custom_call.1} parent=5 // pred_check
        %p107 = pneg %p106
      $region18: #{tpu_custom_call.1} parent=5 // pred_check_branch
        %109 = sbr.rel (%p107) target = $region20
      $region19: #{tpu_custom_call.1} parent=5 // pred_region
        // Predicated region
        $region21: #{tpu_custom_call.1} parent=19 // pred_check
          %p110 = pneg %p56
        $region22: #{tpu_custom_call.1} parent=19 // pred_check_branch
          %112 = sbr.rel (%p110) target = $region24
        $region23: #{tpu_custom_call.1} parent=19 // pred_region
          %s113 = sand.u32 %s46, 1
          %s114 = scalar_lea.sflag [#allocation4], %s113
          %s115 = sand.u32 %s46, 1
          %s116 = smul.addr %s115, 16
          %s117 = scalar_lea.vmem [#allocation3], %s116
          %s119 = ssub.s32 256, 256
          %120 = vsyncadd %s114, %s119
          %s121 = smul.addr %s15, 2
          %s122 = smul.addr %s121, 128
          %s123 = scalar_lea.hbm %s1, %s122
          %s125 = sshll.u32 %s117, 4
          %s126 = int_to_ptr.vmem [resolvable:$true] %s125
          %128 = dma.hbm_to_vmem [thread:$0]  %s123, 256, %s126, %s114
        $region24: #{tpu_custom_call.1} parent=19 // pred_fallthru
          _
      $region20: #{tpu_custom_call.1} parent=5 // pred_fallthru
        _
      %p129 = scmp.le.s32.totalorder 1, %s15
      %p130 = scmp.lt.s32.totalorder %s15, 3
      %p131 = pnand %p129, %p130
      %p132 = pneg %p131
      // Predicated region
      $region25: #{tpu_custom_call.1} parent=5 // pred_check
        _
      $region26: #{tpu_custom_call.1} parent=5 // pred_check_branch
        %134 = sbr.rel (%p131) target = $region28
      $region27: #{tpu_custom_call.1} parent=5 // pred_region
        %s135 = ssub.s32 %s15, 1
        %s136 = sand.u32 %s49, 1
        %s137 = scalar_lea.sflag [#allocation4], %s136
        %s138 = sand.u32 %s49, 1
        %s139 = smul.addr %s138, 16
        %s140 = scalar_lea.vmem [#allocation3], %s139
        // Predicated region
        $region29: #{tpu_custom_call.1} parent=27 // pred_check
          %p141 = pneg %p62
        $region30: #{tpu_custom_call.1} parent=27 // pred_check_branch
          %143 = sbr.rel (%p141) target = $region32
        $region31: #{tpu_custom_call.1} parent=27 // pred_region
          %144 = dma.done %s137, 256
        $region32: #{tpu_custom_call.1} parent=27 // pred_fallthru
          _
        %p145 = pneg %p36
        %p146 = pneg %p33
        %s147 = sand.u32 %s49, 1
        %s148 = scalar_lea.sflag [#allocation4], %s147
        %s149 = sand.u32 %s49, 1
        %s150 = smul.addr %s149, 16
        %s151 = scalar_lea.vmem [#allocation3], %s150
        %p152 = pneg %p62
        %p153 = pneg %p59
        %p154 = pneg %p88
        %p155 = pneg %p85
        %s156 = sand.u32 %s75, 1
        %s157 = scalar_lea.sflag [#allocation5], %s156
        %s158 = sand.u32 %s75, 1
        %s159 = smul.addr %s158, 16
        %s160 = scalar_lea.vmem [#allocation6], %s159
        %v161 = vld [vmem:[%s140] sm:$0xff]
        %v162 = vld [vmem:[%s140 + $0x8] sm:$0xff]
        %163 = vmatprep.subr.mxu0 0.0
        %164 = vmatpush1.xpose.msra.mxu0 0.0
        %165 = vmatprep.subr.mxu0 0.0
        %166 = vmatpush1.xpose.msra.mxu0 0.0
        %167 = vmatprep.subr.mxu0 0.0
        %168 = vmatpush1.xpose.msra.mxu0 0.0
        %169 = vmatprep.subr.mxu0 0.0
        %170 = vmatpush1.xpose.msra.mxu0 0.0
        %171 = vmatprep.subr.mxu0 0.0
        %172 = vmatpush1.xpose.msra.mxu0 0.0
        %173 = vmatprep.subr.mxu0 0.0
        %174 = vmatpush1.xpose.msra.mxu0 0.0
        %175 = vmatprep.subr.mxu0 0.0
        %176 = vmatpush1.xpose.msra.mxu0 0.0
        %177 = vmatprep.subr.mxu0 0.0
        %178 = vmatpush1.xpose.msra.mxu0 0.0
        %179 = vmatprep.subr.mxu0 0.0
        %180 = vmatpush1.xpose.msra.mxu0 0.0
        %181 = vmatprep.subr.mxu0 0.0
        %182 = vmatpush1.xpose.msra.mxu0 0.0
        %183 = vmatprep.subr.mxu0 0.0
        %184 = vmatpush1.xpose.msra.mxu0 0.0
        %185 = vmatprep.subr.mxu0 0.0
        %186 = vmatpush1.xpose.msra.mxu0 0.0
        %187 = vmatprep.subr.mxu0 0.0
        %188 = vmatpush1.xpose.msra.mxu0 0.0
        %189 = vmatprep.subr.mxu0 0.0
        %190 = vmatpush1.xpose.msra.mxu0 0.0
        %191 = vmatprep.subr.mxu0 0.0
        %192 = vmatpush1.xpose.msra.mxu0 0.0
        %193 = vmatprep.subr.mxu0 %v162
        %194 = vmatpush1.xpose.msra.mxu0 %v161
        %195 = vmatprep.subr.mxu0 0.0
        %196 = vmatpush2.xpose.msra.mxu0 0.0
        %197 = vmatprep.subr.mxu0 0.0
        %198 = vmatpush2.xpose.msra.mxu0 0.0
        %199 = vmatprep.subr.mxu0 0.0
        %200 = vmatpush2.xpose.msra.mxu0 0.0
        %201 = vmatprep.subr.mxu0 0.0
        %202 = vmatpush2.xpose.msra.mxu0 0.0
        %203 = vmatprep.subr.mxu0 0.0
        %204 = vmatpush2.xpose.msra.mxu0 0.0
        %205 = vmatprep.subr.mxu0 0.0
        %206 = vmatpush2.xpose.msra.mxu0 0.0
        %207 = vmatprep.subr.mxu0 0.0
        %208 = vmatpush2.xpose.msra.mxu0 0.0
        %209 = vmatprep.subr.mxu0 0.0
        %210 = vmatpush2.xpose.msra.mxu0 0.0
        %211 = vmatprep.subr.mxu0 0.0
        %212 = vmatpush2.xpose.msra.mxu0 0.0
        %213 = vmatprep.subr.mxu0 0.0
        %214 = vmatpush2.xpose.msra.mxu0 0.0
        %215 = vmatprep.subr.mxu0 0.0
        %216 = vmatpush2.xpose.msra.mxu0 0.0
        %217 = vmatprep.subr.mxu0 0.0
        %218 = vmatpush2.xpose.msra.mxu0 0.0
        %219 = vmatprep.subr.mxu0 0.0
        %220 = vmatpush2.xpose.msra.mxu0 0.0
        %221 = vmatprep.subr.mxu0 0.0
        %222 = vmatpush2.xpose.msra.mxu0 0.0
        %223 = vmatprep.subr.mxu0 0.0
        %224 = vmatpush2.xpose.msra.mxu0 0.0
        %225 = vmatprep.subr.mxu0 0.0
        %226 = vmatpush2.xpose.msra.mxu0 0.0
        %227 = vmatprep.mubr.f32.mxu0 %v162
        %228 = vmatmul.mubr.f32.gmra.mxu0 %v161
        %v229 = vpop.f32.mrf.mxu0
        %v230 = vadd.f32 0.0, %v229
        %v231 = vpop.f32.mrf.mxu0
        %232 = vdwg.mxu0
        %vm233 = vcmask 64512
        %v234 = vsel %vm233, %v230, inf
        %235 = vmin.xlane.f32.xlu0 %v234
        %v236 = vpop.xlane.xlu0 %235
        %v237 = vsub.f32 %v236, %v230
        %v238 = vmul.f32 %v237, 1.442695
        %v239 = vpow.pop %v238
        %s240 = sld [smem:[#allocation2]]
        %v241 = vsel %vm233, %v239, 0.0
        %242 = vadd.xlane.f32.xlu0 %v241
        %v243 = vpop.xlane.xlu0 %242
        %v244 = vrcp.pop %v243
        %v245 = vmul.f32 %v239, %v244
        %v246 = vstv %s240
        %v247 = vmul.f32 %v246, %v245
        %v249 = vsel %vm233, %v247, 0
        %251 = vmatprep.subr.mxu0 0.0
        %252 = vmatpush1.msra.mxu0 0.0
        %253 = vmatprep.subr.mxu0 0.0
        %254 = vmatpush1.msra.mxu0 0.0
        %255 = vmatprep.subr.mxu0 0.0
        %256 = vmatpush1.msra.mxu0 0.0
        %257 = vmatprep.subr.mxu0 0.0
        %258 = vmatpush1.msra.mxu0 0.0
        %259 = vmatprep.subr.mxu0 0.0
        %260 = vmatpush1.msra.mxu0 0.0
        %261 = vmatprep.subr.mxu0 0.0
        %262 = vmatpush1.msra.mxu0 0.0
        %263 = vmatprep.subr.mxu0 0.0
        %264 = vmatpush1.msra.mxu0 0.0
        %265 = vmatprep.subr.mxu0 0.0
        %266 = vmatpush1.msra.mxu0 0.0
        %267 = vmatprep.subr.mxu0 0.0
        %268 = vmatpush1.msra.mxu0 0.0
        %269 = vmatprep.subr.mxu0 0.0
        %270 = vmatpush1.msra.mxu0 0.0
        %271 = vmatprep.subr.mxu0 0.0
        %272 = vmatpush1.msra.mxu0 0.0
        %273 = vmatprep.subr.mxu0 0.0
        %274 = vmatpush1.msra.mxu0 0.0
        %275 = vmatprep.subr.mxu0 0.0
        %276 = vmatpush1.msra.mxu0 0.0
        %277 = vmatprep.subr.mxu0 0.0
        %278 = vmatpush1.msra.mxu0 0.0
        %279 = vmatprep.subr.mxu0 0.0
        %280 = vmatpush1.msra.mxu0 0.0
        %281 = vmatprep.subr.mxu0 %v162
        %282 = vmatpush1.msra.mxu0 %v161
        %283 = vmatprep.subr.mxu0 0.0
        %284 = vmatpush2.msra.mxu0 0.0
        %285 = vmatprep.subr.mxu0 0.0
        %286 = vmatpush2.msra.mxu0 0.0
        %287 = vmatprep.subr.mxu0 0.0
        %288 = vmatpush2.msra.mxu0 0.0
        %289 = vmatprep.subr.mxu0 0.0
        %290 = vmatpush2.msra.mxu0 0.0
        %291 = vmatprep.subr.mxu0 0.0
        %292 = vmatpush2.msra.mxu0 0.0
        %293 = vmatprep.subr.mxu0 0.0
        %294 = vmatpush2.msra.mxu0 0.0
        %295 = vmatprep.subr.mxu0 0.0
        %296 = vmatpush2.msra.mxu0 0.0
        %297 = vmatprep.subr.mxu0 0.0
        %298 = vmatpush2.msra.mxu0 0.0
        %299 = vmatprep.subr.mxu0 0.0
        %300 = vmatpush2.msra.mxu0 0.0
        %301 = vmatprep.subr.mxu0 0.0
        %302 = vmatpush2.msra.mxu0 0.0
        %303 = vmatprep.subr.mxu0 0.0
        %304 = vmatpush2.msra.mxu0 0.0
        %305 = vmatprep.subr.mxu0 0.0
        %306 = vmatpush2.msra.mxu0 0.0
        %307 = vmatprep.subr.mxu0 0.0
        %308 = vmatpush2.msra.mxu0 0.0
        %309 = vmatprep.subr.mxu0 0.0
        %310 = vmatpush2.msra.mxu0 0.0
        %311 = vmatprep.subr.mxu0 0.0
        %312 = vmatpush2.msra.mxu0 0.0
        %313 = vmatprep.subr.mxu0 0.0
        %314 = vmatpush2.msra.mxu0 0.0
        %315 = vmatprep.mubr.f32.mxu0 0.0
        %316 = vmatmul.mubr.f32.gmra.mxu0 %v249
        %v317 = vpop.f32.mrf.mxu0
        %v318 = vadd.f32 %v161, %v317
        %v319 = vpop.f32.mrf.mxu0
        %v320 = vadd.f32 %v162, %v319
        %321 = vdwg.mxu0
        %322 = vst [vmem:[%s160] sm:$0xff] %v318
        %323 = vst [vmem:[%s160 + $0x8] sm:$0xff] %v320
        %s324 = sand.u32 %s75, 1
        %s325 = scalar_lea.sflag [#allocation5], %s324
        %s326 = sand.u32 %s75, 1
        %s327 = smul.addr %s326, 16
        %s328 = scalar_lea.vmem [#allocation6], %s327
        // Predicated region
        $region33: #{tpu_custom_call.1} parent=27 // pred_check
          %p329 = pneg %p85
        $region34: #{tpu_custom_call.1} parent=27 // pred_check_branch
          %331 = sbr.rel (%p329) target = $region36
        $region35: #{tpu_custom_call.1} parent=27 // pred_region
          %s333 = ssub.s32 256, 256
          %334 = vsyncadd %s325, %s333
          %s335 = smul.addr %s20, 2
          %s336 = smul.addr %s335, 128
          %s337 = scalar_lea.hbm %s2, %s336
          %s339 = sshll.u32 %s328, 4
          %s340 = int_to_ptr.vmem [resolvable:$true] %s339
          %342 = dma.vmem_to_hbm [thread:$0]  %s340, 256, %s337, %s325
        $region36: #{tpu_custom_call.1} parent=27 // pred_fallthru
          _
      $region28: #{tpu_custom_call.1} parent=5 // pred_fallthru
        _
      %p343 = scmp.le.s32.totalorder 2, %s15
      // Predicated region
      $region37: #{tpu_custom_call.1} parent=5 // pred_check
        %p344 = pneg %p343
      $region38: #{tpu_custom_call.1} parent=5 // pred_check_branch
        %346 = sbr.rel (%p344) target = $region40
      $region39: #{tpu_custom_call.1} parent=5 // pred_region
        %s347 = ssub.s32 %s15, 2
        // Predicated region
        $region41: #{tpu_custom_call.1} parent=39 // pred_check
          %p348 = pneg %p91
        $region42: #{tpu_custom_call.1} parent=39 // pred_check_branch
          %350 = sbr.rel (%p348) target = $region44
        $region43: #{tpu_custom_call.1} parent=39 // pred_region
          %s351 = sand.u32 %s76, 1
          %s352 = scalar_lea.sflag [#allocation5], %s351
          %s353 = sand.u32 %s76, 1
          %s354 = smul.addr %s353, 16
          %s355 = scalar_lea.vmem [#allocation6], %s354
          %356 = dma.done %s352, 256
        $region44: #{tpu_custom_call.1} parent=39 // pred_fallthru
          _
      $region40: #{tpu_custom_call.1} parent=5 // pred_fallthru
        _
    $region6: #{tpu_custom_call.1} parent=1 // loop_footer
      %s19 = sadd.s32 1, %s15
    $region7: #{tpu_custom_call.1} parent=1 // loop_footer_branch
      %14 = sbr.rel target = $region3
    $region8: #{tpu_custom_call.1} parent=1 // loop_exit
      _
    %357 = vsyncpa [#allocation4], 1
    %s358 = scalar_lea.sflag [#allocation4], 1
    %359 = vsyncpa %s358, 1
    %360 = vsyncpa [#allocation5], 1
    %s361 = scalar_lea.sflag [#allocation5], 1
    %362 = vsyncpa %s361, 1

</llo_original>
